<compile_context>
chip_gen: v5e
topology: v5e:2x2
jax: 0.10.0
libtpu: 0.0.40
codegen_flags: <defaults>
</compile_context>

<pallas_src>
import functools

import jax
import jax.numpy as jnp
from jax.experimental import pallas as pl
from jax.experimental.pallas import tpu as pltpu

LANE = 128
H1, H2, H3 = 256, 128, 32     # SimpleNN hidden widths (fc1/fc2/fc3 outputs)
H3P = LANE                    # 32-wide layer lane-padded to 128


def mlp_kernel(x_ref, w1_ref, wp_ref, b_ref, o_ref, *, n_out_p):
    # x arrives as f32; cast to bf16 on-chip (VPU work hidden under the matmuls).
    x = x_ref[...].astype(jnp.bfloat16)                     # (tile_b, Din)   bf16

    # Packed bf16 weight slab, statically sliced (zero-cost views):
    w1 = w1_ref[...]                                        # (Din, 256)
    w2 = wp_ref[0:H1, 0:H2]                                 # (256, 128)
    w3 = wp_ref[H1:H1 + H2, 0:H3P]                          # (128, 128) padded from (128, 32)
    w4 = wp_ref[H1 + H2:H1 + H2 + H3P, 0:n_out_p]           # (128, n_out_p) padded from (32, Dout)

    # Packed f32 bias slab:
    b1 = b_ref[0:1, 0:H1]
    b2 = b_ref[1:2, 0:H2]
    b3 = b_ref[2:3, 0:H3P]
    b4 = b_ref[3:4, 0:n_out_p]

    # Fused matmul + bias + ReLU chain: bf16 MXU operands, f32 accumulation,
    # activations spilled to VMEM as bf16 (numerically identical -- they are cast
    # to bf16 before the next matmul anyway).
    h1 = jnp.maximum(jnp.dot(x, w1, preferred_element_type=jnp.float32) + b1,
                     0.0).astype(jnp.bfloat16)
    h2 = jnp.maximum(jnp.dot(h1, w2, preferred_element_type=jnp.float32) + b2,
                     0.0).astype(jnp.bfloat16)
    h3 = jnp.maximum(jnp.dot(h2, w3, preferred_element_type=jnp.float32) + b3,
                     0.0).astype(jnp.bfloat16)
    out = jnp.dot(h3, w4, preferred_element_type=jnp.float32) + b4
    o_ref[...] = out.astype(o_ref.dtype)                    # lane-dense bf16 store


def pack_params(params):
    """One-time packing of SimpleNN params into the kernel's lane-dense layout.

    params: w1..w4 as (in_features, out_features) f32, b1..b4 as (1, out_features) f32.
    """
    d_in = params["w1"].shape[0]
    d_out = params["w4"].shape[1]
    d_out_p = max(LANE, -(-d_out // LANE) * LANE)   # lane-dense output width
    wc = d_out_p                                    # packed weight slab width (>= 128)

    bf = jnp.bfloat16
    w1 = params["w1"].astype(bf)                                              # (Din, 256)
    w2 = jnp.pad(params["w2"].astype(bf), ((0, 0), (0, wc - H2)))             # (256, wc)
    w3 = jnp.pad(params["w3"].astype(bf), ((0, 0), (0, wc - H3)))             # (128, wc)
    w4 = jnp.pad(params["w4"].astype(bf), ((0, H3P - H3), (0, wc - d_out)))   # (128, wc)
    wp = jnp.concatenate([w2, w3, w4], axis=0)                                # (512, wc)

    wb = max(H1, d_out_p)                           # packed bias slab width

    def _pad_b(b):
        return jnp.pad(b.astype(jnp.float32), ((0, 0), (0, wb - b.shape[1])))

    bias = jnp.concatenate([_pad_b(params["b1"]), _pad_b(params["b2"]),
                            _pad_b(params["b3"]), _pad_b(params["b4"])], axis=0)  # (4, wb)

    return {"w1": w1, "wp": wp, "bias": bias,
            "d_in": d_in, "d_out": d_out, "d_out_p": d_out_p}


def _pick_tile_b(batch, cap=512):
    """Batch-tile policy: aim for >=2 'parallel' grid steps so dual-TC chips (v7x)
    shard the batch axis over both TensorCores; on single-TC v5e/v6e the one extra
    step is ~0.35 us (negligible).  Capped so very large batches keep modest tiles."""
    b16 = -(-batch // 16) * 16          # bf16-packed sublane granularity
    if b16 <= 32:
        return b16                      # too small to split usefully
    half = -(-b16 // 2)
    return min(cap, -(-half // 16) * 16)


def simple_nn_forward(x, packed, *, tile_b=None):
    """x: (B, input_dim) f32. packed: pack_params() output. Returns (B, output_dim) f32."""
    b, d_in = x.shape
    assert d_in == packed["d_in"]
    d_out, d_out_p = packed["d_out"], packed["d_out_p"]

    if tile_b is None:
        tile_b = _pick_tile_b(b)
    tile_b = max(16, -(-tile_b // 16) * 16)   # multiple of 16 (bf16 output tile packing)
    bp = -(-b // tile_b) * tile_b
    if bp != b:
        x = jnp.pad(x, ((0, bp - b), (0, 0)))   # only the batch pad stays in the wrapper

    kernel = functools.partial(mlp_kernel, n_out_p=d_out_p)
    grid = (bp // tile_b,)

    out = pl.pallas_call(
        kernel,
        out_shape=jax.ShapeDtypeStruct((bp, d_out_p), jnp.bfloat16),
        grid_spec=pltpu.PrefetchScalarGridSpec(
            num_scalar_prefetch=0,
            grid=grid,
            in_specs=[
                pl.BlockSpec((tile_b, d_in), lambda i: (i, 0)),
                # Constant (0,0) block index => weights/biases stay resident in VMEM
                # across all batch tiles (no re-DMA per step).
                pl.BlockSpec(packed["w1"].shape, lambda i: (0, 0)),
                pl.BlockSpec(packed["wp"].shape, lambda i: (0, 0)),
                pl.BlockSpec(packed["bias"].shape, lambda i: (0, 0)),
            ],
            out_specs=pl.BlockSpec((tile_b, d_out_p), lambda i: (i, 0)),
        ),
        compiler_params=pltpu.CompilerParams(
            dimension_semantics=("parallel",),
        ),
    )(x, packed["w1"], packed["wp"], packed["bias"])

    # Strip batch padding and the 128-lane output padding; restore f32 output dtype.
    return out[:b, :d_out].astype(jnp.float32)


def init_params(key, input_dim, output_dim):
    # Deterministic, PyTorch-like uniform(-1/sqrt(fan_in), 1/sqrt(fan_in)) init.
    dims = [input_dim, 256, 128, 32, output_dim]
    params = {}
    for li in range(4):
        fan_in, fan_out = dims[li], dims[li + 1]
        key, kw, kb = jax.random.split(key, 3)
        bound = 1.0 / (fan_in ** 0.5)
        params[f"w{li+1}"] = jax.random.uniform(
            kw, (fan_in, fan_out), jnp.float32, -bound, bound)
        params[f"b{li+1}"] = jax.random.uniform(
            kb, (1, fan_out), jnp.float32, -bound, bound)
    return params


def reference_forward(x, p):
    # Pure-JAX f32 reference (matches the PyTorch module's forward).
    h = jnp.maximum(x @ p["w1"] + p["b1"], 0.0)
    h = jnp.maximum(h @ p["w2"] + p["b2"], 0.0)
    h = jnp.maximum(h @ p["w3"] + p["b3"], 0.0)
    return h @ p["w4"] + p["b4"]


def reference_forward_bf16(x, p):
    # Mimics the kernel's numerics: bf16 matmul operands, f32 accumulation,
    # bf16 activation spills, bf16 output slab.
    bf = jnp.bfloat16

    def lin(h_bf, w, b):
        return jnp.dot(h_bf, w.astype(bf), preferred_element_type=jnp.float32) + b

    h = jnp.maximum(lin(x.astype(bf), p["w1"], p["b1"]), 0.0).astype(bf)
    h = jnp.maximum(lin(h, p["w2"], p["b2"]), 0.0).astype(bf)
    h = jnp.maximum(lin(h, p["w3"], p["b3"]), 0.0).astype(bf)
    out = lin(h, p["w4"], p["b4"])
    return out.astype(bf).astype(jnp.float32)


if __name__ == "__main__":
    key = jax.random.PRNGKey(0)
    # B=500 is deliberately not a multiple of 16/256: exercises the ragged-batch pad
    # and yields a 2-step "parallel" grid (keeps both v7x TensorCores busy).
    B, input_dim, output_dim = 500, 64, 2

    kx, kp = jax.random.split(key)
    x = jax.random.normal(kx, (B, input_dim), jnp.float32)
    params = init_params(kp, input_dim, output_dim)
    packed = pack_params(params)

    out = simple_nn_forward(x, packed)
    out = jax.block_until_ready(out)
    assert out.shape == (B, output_dim)
    assert out.dtype == jnp.float32

    # Loose check vs. the pure-f32 reference (bf16 MXU operands + bf16 output slab).
    ref = reference_forward(x, params)
    assert jnp.allclose(out, ref, atol=3e-2, rtol=3e-2), "mismatch vs f32 reference"
    # Tighter check vs. a reference that mimics the kernel's bf16 numerics
    # (5e-3 leaves headroom for single-ULP bf16 rounding differences).
    ref_bf = reference_forward_bf16(x, params)
    assert jnp.allclose(out, ref_bf, atol=5e-3, rtol=5e-3), "mismatch vs bf16 reference"
    print("KERNEL_OK")
</pallas_src>

<mosaic_0001>
module attributes {stable_mosaic.version = 11 : i64} {
  func.func @mlp_kernel(%arg0: i32, %arg1: memref<256x64xf32, #tpu.memory_space<vmem>>, %arg2: memref<64x256xbf16, #tpu.memory_space<vmem>>, %arg3: memref<512x128xbf16, #tpu.memory_space<vmem>>, %arg4: memref<4x256xf32, #tpu.memory_space<vmem>>, %arg5: memref<256x128xbf16, #tpu.memory_space<vmem>>) attributes {dimension_semantics = [#tpu.dimension_semantics<parallel>], iteration_bounds = array<i64: 2>, scalar_prefetch = 0 : i64, scratch_operands = 0 : i64, tpu.core_type = #tpu.core_type<tc>, window_params = [{transform_indices = @transform_0, window_bounds = array<i64: 256, 64>}, {pipeline_mode = #tpu.pipeline_mode<synchronous>, transform_indices = @transform_1, window_bounds = array<i64: 64, 256>}, {pipeline_mode = #tpu.pipeline_mode<synchronous>, transform_indices = @transform_2, window_bounds = array<i64: 512, 128>}, {pipeline_mode = #tpu.pipeline_mode<synchronous>, transform_indices = @transform_3, window_bounds = array<i64: 4, 256>}, {transform_indices = @transform_4, window_bounds = array<i64: 256, 128>}]} {
    %c0 = arith.constant 0 : index
    %c0_0 = arith.constant 0 : index
    %0 = vector.load %arg1[%c0, %c0_0] : memref<256x64xf32, #tpu.memory_space<vmem>>, vector<256x64xf32>
    %1 = arith.truncf %0 : vector<256x64xf32> to vector<256x64xbf16>
    %c0_1 = arith.constant 0 : index
    %c0_2 = arith.constant 0 : index
    %2 = vector.load %arg2[%c0_1, %c0_2] : memref<64x256xbf16, #tpu.memory_space<vmem>>, vector<64x256xbf16>
    %c0_3 = arith.constant 0 : index
    %c0_4 = arith.constant 0 : index
    %3 = vector.load %arg3[%c0_3, %c0_4] : memref<512x128xbf16, #tpu.memory_space<vmem>>, vector<256x128xbf16>
    %c256 = arith.constant 256 : index
    %c0_5 = arith.constant 0 : index
    %4 = vector.load %arg3[%c256, %c0_5] : memref<512x128xbf16, #tpu.memory_space<vmem>>, vector<128x128xbf16>
    %c384 = arith.constant 384 : index
    %c0_6 = arith.constant 0 : index
    %5 = vector.load %arg3[%c384, %c0_6] : memref<512x128xbf16, #tpu.memory_space<vmem>>, vector<128x128xbf16>
    %c0_7 = arith.constant 0 : index
    %c0_8 = arith.constant 0 : index
    %6 = vector.load %arg4[%c0_7, %c0_8] : memref<4x256xf32, #tpu.memory_space<vmem>>, vector<1x256xf32>
    %c1 = arith.constant 1 : index
    %c0_9 = arith.constant 0 : index
    %7 = vector.load %arg4[%c1, %c0_9] : memref<4x256xf32, #tpu.memory_space<vmem>>, vector<1x128xf32>
    %c2 = arith.constant 2 : index
    %c0_10 = arith.constant 0 : index
    %8 = vector.load %arg4[%c2, %c0_10] : memref<4x256xf32, #tpu.memory_space<vmem>>, vector<1x128xf32>
    %c3 = arith.constant 3 : index
    %c0_11 = arith.constant 0 : index
    %9 = vector.load %arg4[%c3, %c0_11] : memref<4x256xf32, #tpu.memory_space<vmem>>, vector<1x128xf32>
    %cst = arith.constant dense<0.000000e+00> : vector<256x256xf32>
    %10 = tpu.matmul %1, %2, %cst {dimension_numbers = #tpu.dot_dimension_numbers<[1], [0], [0], [1], [0, 0, 1, 1], [], []>} : vector<256x64xbf16>, vector<64x256xbf16>, vector<256x256xf32> -> vector<256x256xf32>
    %11 = vector.broadcast %6 : vector<1x256xf32> to vector<256x256xf32>
    %12 = arith.addf %10, %11 : vector<256x256xf32>
    %cst_12 = arith.constant 0.000000e+00 : f32
    %13 = vector.broadcast %cst_12 : f32 to vector<256x256xf32>
    %14 = arith.maximumf %12, %13 : vector<256x256xf32>
    %15 = arith.truncf %14 : vector<256x256xf32> to vector<256x256xbf16>
    %cst_13 = arith.constant dense<0.000000e+00> : vector<256x128xf32>
    %16 = tpu.matmul %15, %3, %cst_13 {dimension_numbers = #tpu.dot_dimension_numbers<[1], [0], [0], [1], [0, 0, 1, 1], [], []>} : vector<256x256xbf16>, vector<256x128xbf16>, vector<256x128xf32> -> vector<256x128xf32>
    %17 = vector.broadcast %7 : vector<1x128xf32> to vector<256x128xf32>
    %18 = arith.addf %16, %17 : vector<256x128xf32>
    %cst_14 = arith.constant 0.000000e+00 : f32
    %19 = vector.broadcast %cst_14 : f32 to vector<256x128xf32>
    %20 = arith.maximumf %18, %19 : vector<256x128xf32>
    %21 = arith.truncf %20 : vector<256x128xf32> to vector<256x128xbf16>
    %cst_15 = arith.constant dense<0.000000e+00> : vector<256x128xf32>
    %22 = tpu.matmul %21, %4, %cst_15 {dimension_numbers = #tpu.dot_dimension_numbers<[1], [0], [0], [1], [0, 0, 1, 1], [], []>} : vector<256x128xbf16>, vector<128x128xbf16>, vector<256x128xf32> -> vector<256x128xf32>
    %23 = vector.broadcast %8 : vector<1x128xf32> to vector<256x128xf32>
    %24 = arith.addf %22, %23 : vector<256x128xf32>
    %cst_16 = arith.constant 0.000000e+00 : f32
    %25 = vector.broadcast %cst_16 : f32 to vector<256x128xf32>
    %26 = arith.maximumf %24, %25 : vector<256x128xf32>
    %27 = arith.truncf %26 : vector<256x128xf32> to vector<256x128xbf16>
    %cst_17 = arith.constant dense<0.000000e+00> : vector<256x128xf32>
    %28 = tpu.matmul %27, %5, %cst_17 {dimension_numbers = #tpu.dot_dimension_numbers<[1], [0], [0], [1], [0, 0, 1, 1], [], []>} : vector<256x128xbf16>, vector<128x128xbf16>, vector<256x128xf32> -> vector<256x128xf32>
    %29 = vector.broadcast %9 : vector<1x128xf32> to vector<256x128xf32>
    %30 = arith.addf %28, %29 : vector<256x128xf32>
    %31 = arith.truncf %30 : vector<256x128xf32> to vector<256x128xbf16>
    %c0_18 = arith.constant 0 : index
    %c0_19 = arith.constant 0 : index
    %32 = vector.load %arg5[%c0_18, %c0_19] : memref<256x128xbf16, #tpu.memory_space<vmem>>, vector<256x128xbf16>
    tpu.vector_store %arg5[%c0_18, %c0_19], %31 {strides = array<i32>} : memref<256x128xbf16, #tpu.memory_space<vmem>>, vector<256x128xbf16>,
    return
  }
  func.func @transform_0(%arg0: i32) -> (i32, i32) {
    %c0_i32 = arith.constant 0 : i32
    %c0_i32_0 = arith.constant 0 : i32
    return %arg0, %c0_i32 : i32, i32
  }
  func.func @transform_1(%arg0: i32) -> (i32, i32) {
    %c0_i32 = arith.constant 0 : i32
    %c0_i32_0 = arith.constant 0 : i32
    %c0_i32_1 = arith.constant 0 : i32
    return %c0_i32, %c0_i32_0 : i32, i32
  }
  func.func @transform_2(%arg0: i32) -> (i32, i32) {
    %c0_i32 = arith.constant 0 : i32
    %c0_i32_0 = arith.constant 0 : i32
    %c0_i32_1 = arith.constant 0 : i32
    return %c0_i32, %c0_i32_0 : i32, i32
  }
  func.func @transform_3(%arg0: i32) -> (i32, i32) {
    %c0_i32 = arith.constant 0 : i32
    %c0_i32_0 = arith.constant 0 : i32
    %c0_i32_1 = arith.constant 0 : i32
    return %c0_i32, %c0_i32_0 : i32, i32
  }
  func.func @transform_4(%arg0: i32) -> (i32, i32) {
    %c0_i32 = arith.constant 0 : i32
    %c0_i32_0 = arith.constant 0 : i32
    return %arg0, %c0_i32 : i32, i32
  }
}

</mosaic_0001>

<llo_original>
// kernel: tpu_custom_call.1
$region0: #{tpu_custom_call.1}
  #allocation0 [shape = 'u32[]', space=smem, size = 0x4, offset = 0x4, fixed_abs, tag = 'smem constant byte address 0x4 - core index']
  #allocation1 [shape = 'u32[72,128]{1,0:T(1,128)}', space=vmem, size = 0x9000, scoped, tag = 'internal scratch']
  %s0 = inlined_call_operand.vmem [shape: f32[512,64], index: 0, kind: input, shape index: {}]
  %s1 = inlined_call_operand.vmem [shape: bf16[64,256], index: 1, kind: input, shape index: {}]
  %s2 = inlined_call_operand.vmem [shape: bf16[512,128], index: 2, kind: input, shape index: {}]
  %s3 = inlined_call_operand.vmem [shape: f32[4,256], index: 3, kind: input, shape index: {}]
  %s4 = inlined_call_operand.hbm [shape: bf16[512,128], index: 4, kind: output, shape index: {}]
  %s5 = sld [smem:[#allocation0]]
  $region49: #{tpu_custom_call.1} parent=0
    _
  %s7 = ssub.s32 1, %s5
  %s8 = scalar_select 0, %s7, %s5
  $region1: #{tpu_custom_call.1} parent=0
    #allocation2 [shape = 'u8[131072]{0}', space=vmem, size = 0x20000, scoped, tag = 'output window, operand 0']
    #allocation3 [shape = 's32[2]{0}', space=sflag, size = 0x8, scoped, tag = 'scoped memory for tpu_custom_call.1']
    %9 = vsyncpa [#allocation3], 0
    %s10 = scalar_lea.sflag [#allocation3], 1
    %11 = vsyncpa %s10, 0
    loop: start=0, step=1, limit=4
    $region2: #{tpu_custom_call.1} parent=1 // loop_pre_header
      _
    $region3: #{tpu_custom_call.1} parent=1 // loop_header
      %s13 = sphi 0, %s17
      %p14 = scmp.ge.s32.totalorder %s13, 4
      %s23 = sphi 0, %s25
      %s26 = sphi 0, %s23
      %s27 = sphi 0, %s26
      %s43 = sphi 0, %s27
      %s47 = sphi 0, %s47
      %s49 = sphi 0, %s47
      %s50 = sphi 0, %s49
      %s64 = sphi 0, %s50
      %s68 = sphi 0, %s68
      %s70 = sphi 0, %s68
      %s71 = sphi 0, %s70
      %s85 = sphi 0, %s71
      %s89 = sphi 0, %s89
      %s91 = sphi 0, %s89
      %s92 = sphi 0, %s91
      %s106 = sphi 0, %s92
      %s112 = sphi 0, %s114
      %s115 = sphi 0, %s112
      %s116 = sphi 0, %s115
      %s132 = sphi 0, %s116
    $region4: #{tpu_custom_call.1} parent=1 // loop_header_branch
      %16 = sbr.rel (%p14) target = $region8
    $region5: #{tpu_custom_call.1} parent=1 // loop_body
      %s18 = ssub.s32 %s13, 1
      %s19 = ssub.s32 %s13, 2
      %s20 = sadd.s32 %s13, 1
      %s21 = ssub.s32 %s13, %s20
      %p22 = scmp.eq.s32.totalorder %s21, 0
      %s24 = sadd.s32 %s23, 1
      %s25 = scalar_select %p22, %s23, %s24
      %p28 = pneg %p22
      %p29 = scmp.eq.s32.totalorder %s13, 1
      %p30 = por %p28, %p29
      %p31 = scmp.ne.s32.totalorder %s23, %s26
      %p32 = scmp.eq.s32.totalorder %s13, 0
      %p33 = por %p31, %p32
      %p34 = scmp.ne.s32.totalorder %s23, %s26
      %p35 = scmp.eq.s32.totalorder %s18, 1
      %p36 = por %p34, %p35
      %p37 = scmp.ne.s32.totalorder %s26, %s27
      %p38 = scmp.eq.s32.totalorder %s18, 0
      %p39 = por %p37, %p38
      %p40 = scmp.ne.s32.totalorder %s26, %s27
      %p41 = scmp.eq.s32.totalorder %s19, 1
      %p42 = por %p40, %p41
      %p44 = scmp.ne.s32.totalorder %s27, %s43
      %p45 = scmp.eq.s32.totalorder %s19, 0
      %p46 = por %p44, %p45
      %s48 = sadd.s32 %s47, 1
      %p51 = scmp.eq.s32.totalorder %s13, 1
      %p52 = scmp.ne.s32.totalorder %s47, %s49
      %p53 = scmp.eq.s32.totalorder %s13, 0
      %p54 = por %p52, %p53
      %p55 = scmp.ne.s32.totalorder %s47, %s49
      %p56 = scmp.eq.s32.totalorder %s18, 1
      %p57 = por %p55, %p56
      %p58 = scmp.ne.s32.totalorder %s49, %s50
      %p59 = scmp.eq.s32.totalorder %s18, 0
      %p60 = por %p58, %p59
      %p61 = scmp.ne.s32.totalorder %s49, %s50
      %p62 = scmp.eq.s32.totalorder %s19, 1
      %p63 = por %p61, %p62
      %p65 = scmp.ne.s32.totalorder %s50, %s64
      %p66 = scmp.eq.s32.totalorder %s19, 0
      %p67 = por %p65, %p66
      %s69 = sadd.s32 %s68, 1
      %p72 = scmp.eq.s32.totalorder %s13, 1
      %p73 = scmp.ne.s32.totalorder %s68, %s70
      %p74 = scmp.eq.s32.totalorder %s13, 0
      %p75 = por %p73, %p74
      %p76 = scmp.ne.s32.totalorder %s68, %s70
      %p77 = scmp.eq.s32.totalorder %s18, 1
      %p78 = por %p76, %p77
      %p79 = scmp.ne.s32.totalorder %s70, %s71
      %p80 = scmp.eq.s32.totalorder %s18, 0
      %p81 = por %p79, %p80
      %p82 = scmp.ne.s32.totalorder %s70, %s71
      %p83 = scmp.eq.s32.totalorder %s19, 1
      %p84 = por %p82, %p83
      %p86 = scmp.ne.s32.totalorder %s71, %s85
      %p87 = scmp.eq.s32.totalorder %s19, 0
      %p88 = por %p86, %p87
      %s90 = sadd.s32 %s89, 1
      %p93 = scmp.eq.s32.totalorder %s13, 1
      %p94 = scmp.ne.s32.totalorder %s89, %s91
      %p95 = scmp.eq.s32.totalorder %s13, 0
      %p96 = por %p94, %p95
      %p97 = scmp.ne.s32.totalorder %s89, %s91
      %p98 = scmp.eq.s32.totalorder %s18, 1
      %p99 = por %p97, %p98
      %p100 = scmp.ne.s32.totalorder %s91, %s92
      %p101 = scmp.eq.s32.totalorder %s18, 0
      %p102 = por %p100, %p101
      %p103 = scmp.ne.s32.totalorder %s91, %s92
      %p104 = scmp.eq.s32.totalorder %s19, 1
      %p105 = por %p103, %p104
      %p107 = scmp.ne.s32.totalorder %s92, %s106
      %p108 = scmp.eq.s32.totalorder %s19, 0
      %p109 = por %p107, %p108
      %s110 = ssub.s32 %s13, %s20
      %p111 = scmp.eq.s32.totalorder %s110, 0
      %s113 = sadd.s32 %s112, 1
      %s114 = scalar_select %p111, %s112, %s113
      %p117 = pneg %p111
      %p118 = scmp.eq.s32.totalorder %s13, 1
      %p119 = por %p117, %p118
      %p120 = scmp.ne.s32.totalorder %s112, %s115
      %p121 = scmp.eq.s32.totalorder %s13, 0
      %p122 = por %p120, %p121
      %p123 = scmp.ne.s32.totalorder %s112, %s115
      %p124 = scmp.eq.s32.totalorder %s18, 1
      %p125 = por %p123, %p124
      %p126 = scmp.ne.s32.totalorder %s115, %s116
      %p127 = scmp.eq.s32.totalorder %s18, 0
      %p128 = por %p126, %p127
      %p129 = scmp.ne.s32.totalorder %s115, %s116
      %p130 = scmp.eq.s32.totalorder %s19, 1
      %p131 = por %p129, %p130
      %p133 = scmp.ne.s32.totalorder %s116, %s132
      %p134 = scmp.eq.s32.totalorder %s19, 0
      %p135 = por %p133, %p134
      %p136 = scmp.le.s32.totalorder 1, %s13
      %p137 = scmp.lt.s32.totalorder %s13, 3
      %p138 = pnand %p136, %p137
      %p139 = pneg %p138
      // Predicated region
      $region9: #{tpu_custom_call.1} parent=5 // pred_check
        _
      $region10: #{tpu_custom_call.1} parent=5 // pred_check_branch
        %141 = sbr.rel (%p138) target = $region12
      $region11: #{tpu_custom_call.1} parent=5 // pred_region
        %s142 = ssub.s32 %s13, 1
        // Predicated region
        $region13: #{tpu_custom_call.1} parent=11 // pred_check
          %p143 = pneg %p60
        $region14: #{tpu_custom_call.1} parent=11 // pred_check_branch
          %145 = sbr.rel (%p143) target = $region16
        $region15: #{tpu_custom_call.1} parent=11 // pred_region
          _
        $region16: #{tpu_custom_call.1} parent=11 // pred_fallthru
          _
        // Predicated region
        $region17: #{tpu_custom_call.1} parent=11 // pred_check
          %p146 = pneg %p81
        $region18: #{tpu_custom_call.1} parent=11 // pred_check_branch
          %148 = sbr.rel (%p146) target = $region20
        $region19: #{tpu_custom_call.1} parent=11 // pred_region
          _
        $region20: #{tpu_custom_call.1} parent=11 // pred_fallthru
          _
        // Predicated region
        $region21: #{tpu_custom_call.1} parent=11 // pred_check
          %p149 = pneg %p102
        $region22: #{tpu_custom_call.1} parent=11 // pred_check_branch
          %151 = sbr.rel (%p149) target = $region24
        $region23: #{tpu_custom_call.1} parent=11 // pred_region
          _
        $region24: #{tpu_custom_call.1} parent=11 // pred_fallthru
          _
      $region12: #{tpu_custom_call.1} parent=5 // pred_fallthru
        _
      %p152 = scmp.lt.s32.totalorder %s13, 2
      // Predicated region
      $region25: #{tpu_custom_call.1} parent=5 // pred_check
        %p153 = pneg %p152
      $region26: #{tpu_custom_call.1} parent=5 // pred_check_branch
        %155 = sbr.rel (%p153) target = $region28
      $region27: #{tpu_custom_call.1} parent=5 // pred_region
        // Predicated region
        $region29: #{tpu_custom_call.1} parent=27 // pred_check
          %p156 = pneg %p33
        $region30: #{tpu_custom_call.1} parent=27 // pred_check_branch
          %158 = sbr.rel (%p156) target = $region32
        $region31: #{tpu_custom_call.1} parent=27 // pred_region
          %s159 = smul.u32 32, %s13
          %p160 = scmp.lt.s32.totalorder %s159, 63
          %s161 = scalar_select %p160, %s159, 63
          %s162 = smul.addr %s161, 8
          %s163 = scalar_lea.vmem %s0, %s162
          %s164 = smul.u32 32, %s13
        $region32: #{tpu_custom_call.1} parent=27 // pred_fallthru
          _
      $region28: #{tpu_custom_call.1} parent=5 // pred_fallthru
        _
      %p165 = scmp.le.s32.totalorder 1, %s13
      %p166 = scmp.lt.s32.totalorder %s13, 3
      %p167 = pnand %p165, %p166
      %p168 = pneg %p167
      // Predicated region
      $region33: #{tpu_custom_call.1} parent=5 // pred_check
        _
      $region34: #{tpu_custom_call.1} parent=5 // pred_check_branch
        %170 = sbr.rel (%p167) target = $region36
      $region35: #{tpu_custom_call.1} parent=5 // pred_region
        %s171 = ssub.s32 %s13, 1
        %s172 = smul.u32 32, %s18
        %p173 = scmp.lt.s32.totalorder %s172, 63
        %s174 = scalar_select %p173, %s172, 63
        %s175 = smul.addr %s174, 8
        %s176 = scalar_lea.vmem %s0, %s175
        %p177 = pneg %p39
        %p178 = pneg %p36
        %p179 = pneg %p60
        %p180 = pneg %p57
        %p181 = pneg %p81
        %p182 = pneg %p78
        %p183 = pneg %p102
        %p184 = pneg %p99
        %p185 = pneg %p128
        %p186 = pneg %p125
        %s187 = sand.u32 %s115, 1
        %s188 = scalar_lea.sflag [#allocation3], %s187
        %s189 = sand.u32 %s115, 1
        %s190 = smul.addr %s189, 128
        %s191 = scalar_lea.vmem [#allocation2], %s190
        %s192 = smul.u32 32, %s18
        %p193 = scmp.lt.s32.totalorder %s192, 63
        %s194 = scalar_select %p193, %s192, 63
        %s195 = smul.addr %s194, 8
        %s196 = scalar_lea.vmem %s0, %s195
        %s197 = smul.u32 32, %s18
        %s198 = smul.u32 32, %s18
        %v200 = vld [vmem:[%s196] sm:$0xff]
        %v201 = vld [vmem:[%s196 + $0x8] sm:$0xff]
        %v202 = vld [vmem:[%s196 + $0x10] sm:$0xff]
        %v203 = vld [vmem:[%s196 + $0x18] sm:$0xff]
        %v204 = vld [vmem:[%s196 + $0x20] sm:$0xff]
        %v205 = vld [vmem:[%s196 + $0x28] sm:$0xff]
        %v206 = vld [vmem:[%s196 + $0x30] sm:$0xff]
        %v207 = vld [vmem:[%s196 + $0x38] sm:$0xff]
        %v208 = vld [vmem:[%s196 + $0x40] sm:$0xff]
        %v209 = vld [vmem:[%s196 + $0x48] sm:$0xff]
        %v210 = vld [vmem:[%s196 + $0x50] sm:$0xff]
        %v211 = vld [vmem:[%s196 + $0x58] sm:$0xff]
        %v212 = vld [vmem:[%s196 + $0x60] sm:$0xff]
        %v213 = vld [vmem:[%s196 + $0x68] sm:$0xff]
        %v214 = vld [vmem:[%s196 + $0x70] sm:$0xff]
        %v215 = vld [vmem:[%s196 + $0x78] sm:$0xff]
        %v216 = vld [vmem:[%s196 + $0x80] sm:$0xff]
        %v217 = vld [vmem:[%s196 + $0x88] sm:$0xff]
        %v218 = vld [vmem:[%s196 + $0x90] sm:$0xff]
        %v219 = vld [vmem:[%s196 + $0x98] sm:$0xff]
        %v220 = vld [vmem:[%s196 + $0xa0] sm:$0xff]
        %v221 = vld [vmem:[%s196 + $0xa8] sm:$0xff]
        %v222 = vld [vmem:[%s196 + $0xb0] sm:$0xff]
        %v223 = vld [vmem:[%s196 + $0xb8] sm:$0xff]
        %v224 = vld [vmem:[%s196 + $0xc0] sm:$0xff]
        %v225 = vld [vmem:[%s196 + $0xc8] sm:$0xff]
        %v226 = vld [vmem:[%s196 + $0xd0] sm:$0xff]
        %v227 = vld [vmem:[%s196 + $0xd8] sm:$0xff]
        %v228 = vld [vmem:[%s196 + $0xe0] sm:$0xff]
        %v229 = vld [vmem:[%s196 + $0xe8] sm:$0xff]
        %v230 = vld [vmem:[%s196 + $0xf0] sm:$0xff]
        %v231 = vld [vmem:[%s196 + $0xf8] sm:$0xff]
        %v232 = vpack.c.bf16 %v201, %v200
        %v233 = vpack.c.bf16 %v203, %v202
        %v234 = vpack.c.bf16 %v205, %v204
        %v235 = vpack.c.bf16 %v207, %v206
        %v236 = vpack.c.bf16 %v209, %v208
        %v237 = vpack.c.bf16 %v211, %v210
        %v238 = vpack.c.bf16 %v213, %v212
        %v239 = vpack.c.bf16 %v215, %v214
        %v240 = vpack.c.bf16 %v217, %v216
        %v241 = vpack.c.bf16 %v219, %v218
        %v242 = vpack.c.bf16 %v221, %v220
        %v243 = vpack.c.bf16 %v223, %v222
        %v244 = vpack.c.bf16 %v225, %v224
        %v245 = vpack.c.bf16 %v227, %v226
        %v246 = vpack.c.bf16 %v229, %v228
        %v247 = vpack.c.bf16 %v231, %v230
        %v248 = vld [vmem:[%s1] sm:$0xff]
        %v249 = vld [vmem:[%s1 + $0x8] sm:$0xff]
        %v250 = vld [vmem:[%s1 + $0x10] sm:$0xff]
        %v251 = vld [vmem:[%s1 + $0x18] sm:$0xff]
        %v252 = vld [vmem:[%s1 + $0x20] sm:$0xff]
        %v253 = vld [vmem:[%s1 + $0x28] sm:$0xff]
        %v254 = vld [vmem:[%s1 + $0x30] sm:$0xff]
        %v255 = vld [vmem:[%s1 + $0x38] sm:$0xff]
        %v256 = vld [vmem:[%s2] sm:$0xf]
        %v257 = vld [vmem:[%s2 + $0x4] sm:$0xf]
        %v258 = vld [vmem:[%s2 + $0x8] sm:$0xf]
        %v259 = vld [vmem:[%s2 + $0xc] sm:$0xf]
        %v260 = vld [vmem:[%s2 + $0x10] sm:$0xf]
        %v261 = vld [vmem:[%s2 + $0x14] sm:$0xf]
        %v262 = vld [vmem:[%s2 + $0x18] sm:$0xf]
        %v263 = vld [vmem:[%s2 + $0x1c] sm:$0xf]
        %v264 = vld [vmem:[%s2 + $0x20] sm:$0xf]
        %v265 = vld [vmem:[%s2 + $0x24] sm:$0xf]
        %v266 = vld [vmem:[%s2 + $0x28] sm:$0xf]
        %v267 = vld [vmem:[%s2 + $0x2c] sm:$0xf]
        %v268 = vld [vmem:[%s2 + $0x30] sm:$0xf]
        %v269 = vld [vmem:[%s2 + $0x34] sm:$0xf]
        %v270 = vld [vmem:[%s2 + $0x38] sm:$0xf]
        %v271 = vld [vmem:[%s2 + $0x3c] sm:$0xf]
        %v272 = vld [vmem:[%s2 + $0x40] sm:$0xf]
        %v273 = vld [vmem:[%s2 + $0x44] sm:$0xf]
        %v274 = vld [vmem:[%s2 + $0x48] sm:$0xf]
        %v275 = vld [vmem:[%s2 + $0x4c] sm:$0xf]
        %v276 = vld [vmem:[%s2 + $0x50] sm:$0xf]
        %v277 = vld [vmem:[%s2 + $0x54] sm:$0xf]
        %v278 = vld [vmem:[%s2 + $0x58] sm:$0xf]
        %v279 = vld [vmem:[%s2 + $0x5c] sm:$0xf]
        %v280 = vld [vmem:[%s2 + $0x60] sm:$0xf]
        %v281 = vld [vmem:[%s2 + $0x64] sm:$0xf]
        %v282 = vld [vmem:[%s2 + $0x68] sm:$0xf]
        %v283 = vld [vmem:[%s2 + $0x6c] sm:$0xf]
        %v284 = vld [vmem:[%s2 + $0x70] sm:$0xf]
        %v285 = vld [vmem:[%s2 + $0x74] sm:$0xf]
        %v286 = vld [vmem:[%s2 + $0x78] sm:$0xf]
        %v287 = vld [vmem:[%s2 + $0x7c] sm:$0xf]
        %v288 = vld [vmem:[%s2 + $0x80] sm:$0xf]
        %v289 = vld [vmem:[%s2 + $0x84] sm:$0xf]
        %v290 = vld [vmem:[%s2 + $0x88] sm:$0xf]
        %v291 = vld [vmem:[%s2 + $0x8c] sm:$0xf]
        %v292 = vld [vmem:[%s2 + $0x90] sm:$0xf]
        %v293 = vld [vmem:[%s2 + $0x94] sm:$0xf]
        %v294 = vld [vmem:[%s2 + $0x98] sm:$0xf]
        %v295 = vld [vmem:[%s2 + $0x9c] sm:$0xf]
        %v296 = vld [vmem:[%s2 + $0xa0] sm:$0xf]
        %v297 = vld [vmem:[%s2 + $0xa4] sm:$0xf]
        %v298 = vld [vmem:[%s2 + $0xa8] sm:$0xf]
        %v299 = vld [vmem:[%s2 + $0xac] sm:$0xf]
        %v300 = vld [vmem:[%s2 + $0xb0] sm:$0xf]
        %v301 = vld [vmem:[%s2 + $0xb4] sm:$0xf]
        %v302 = vld [vmem:[%s2 + $0xb8] sm:$0xf]
        %v303 = vld [vmem:[%s2 + $0xbc] sm:$0xf]
        %v304 = vld [vmem:[%s2 + $0xc0] sm:$0xf]
        %v305 = vld [vmem:[%s2 + $0xc4] sm:$0xf]
        %v306 = vld [vmem:[%s2 + $0xc8] sm:$0xf]
        %v307 = vld [vmem:[%s2 + $0xcc] sm:$0xf]
        %v308 = vld [vmem:[%s2 + $0xd0] sm:$0xf]
        %v309 = vld [vmem:[%s2 + $0xd4] sm:$0xf]
        %v310 = vld [vmem:[%s2 + $0xd8] sm:$0xf]
        %v311 = vld [vmem:[%s2 + $0xdc] sm:$0xf]
        %v312 = vld [vmem:[%s2 + $0xe0] sm:$0xf]
        %v313 = vld [vmem:[%s2 + $0xe4] sm:$0xf]
        %v314 = vld [vmem:[%s2 + $0xe8] sm:$0xf]
        %v315 = vld [vmem:[%s2 + $0xec] sm:$0xf]
        %v316 = vld [vmem:[%s2 + $0xf0] sm:$0xf]
        %v317 = vld [vmem:[%s2 + $0xf4] sm:$0xf]
        %v318 = vld [vmem:[%s2 + $0xf8] sm:$0xf]
        %v319 = vld [vmem:[%s2 + $0xfc] sm:$0xf]
        %v320 = vld [vmem:[%s3] ss:$4 sm:$0x3]
        %v321 = vld [vmem:[%s3 + $0x1] sm:$0x1]
        %v322 = vld [vmem:[%s3 + $0x2] sm:$0x1]
        %v323 = vld [vmem:[%s3 + $0x3] sm:$0x1]
        %v325 = vperm.slane %v320, 0
        %v326 = vperm.slane %v320, 1
        %v337 = vunpack.c.l.b16 %v248
        %v338 = vunpack.c.h.b16 %v248
        %v339 = vunpack.c.l.b16 %v249
        %v340 = vunpack.c.h.b16 %v249
        %v341 = vunpack.c.l.b16 %v250
        %v342 = vunpack.c.h.b16 %v250
        %v343 = vunpack.c.l.b16 %v251
        %v344 = vunpack.c.h.b16 %v251
        %v345 = vunpack.c.l.b16 %v252
        %v346 = vunpack.c.h.b16 %v252
        %v347 = vunpack.c.l.b16 %v253
        %v348 = vunpack.c.h.b16 %v253
        %v349 = vunpack.c.l.b16 %v254
        %v350 = vunpack.c.h.b16 %v254
        %v351 = vunpack.c.l.b16 %v255
        %v352 = vunpack.c.h.b16 %v255
        %v353 = vpack.c.b16 %v339, %v337
        %v354 = vpack.c.b16 %v340, %v338
        %v355 = vpack.c.b16 %v343, %v341
        %v356 = vpack.c.b16 %v344, %v342
        %v357 = vpack.c.b16 %v347, %v345
        %v358 = vpack.c.b16 %v348, %v346
        %v359 = vpack.c.b16 %v351, %v349
        %v360 = vpack.c.b16 %v352, %v350
        %vm369 = vcmask 523264
        %v371 = vsel %vm369, %v232, 0
        %v374 = vsel %vm369, %v233, 0
        %v377 = vsel %vm369, %v234, 0
        %v380 = vsel %vm369, %v235, 0
        %v383 = vsel %vm369, %v236, 0
        %v386 = vsel %vm369, %v237, 0
        %v389 = vsel %vm369, %v238, 0
        %v392 = vsel %vm369, %v239, 0
        %v395 = vsel %vm369, %v240, 0
        %v398 = vsel %vm369, %v241, 0
        %v401 = vsel %vm369, %v242, 0
        %v404 = vsel %vm369, %v243, 0
        %v407 = vsel %vm369, %v244, 0
        %v410 = vsel %vm369, %v245, 0
        %v413 = vsel %vm369, %v246, 0
        %v416 = vsel %vm369, %v247, 0
        %418 = vmatpush.bf16.msra.mxu0 0
        %419 = vmatpush.bf16.msra.mxu0 0
        %420 = vmatpush.bf16.msra.mxu0 0
        %421 = vmatpush.bf16.msra.mxu0 0
        %422 = vmatpush.bf16.msra.mxu0 %v359
        %423 = vmatpush.bf16.msra.mxu0 %v357
        %424 = vmatpush.bf16.msra.mxu0 %v355
        %425 = vmatpush.bf16.msra.mxu0 %v353
        %426 = vmatmul.bf16.gmra.mxu0 %v371
        %v427 = vpop.f32.mrf.mxu0
        %v428 = vadd.f32 %v325, %v427
        %v429 = vpop.f32.mrf.mxu0
        %v430 = vadd.f32 %v325, %v429
        %431 = vmatmul.bf16.gmra.mxu0 %v374
        %v432 = vpop.f32.mrf.mxu0
        %v433 = vadd.f32 %v325, %v432
        %v434 = vpop.f32.mrf.mxu0
        %v435 = vadd.f32 %v325, %v434
        %436 = vmatmul.bf16.gmra.mxu0 %v377
        %v437 = vpop.f32.mrf.mxu0
        %v438 = vadd.f32 %v325, %v437
        %v439 = vpop.f32.mrf.mxu0
        %v440 = vadd.f32 %v325, %v439
        %441 = vmatmul.bf16.gmra.mxu0 %v380
        %v442 = vpop.f32.mrf.mxu0
        %v443 = vadd.f32 %v325, %v442
        %v444 = vpop.f32.mrf.mxu0
        %v445 = vadd.f32 %v325, %v444
        %446 = vmatmul.bf16.gmra.mxu0 %v383
        %v447 = vpop.f32.mrf.mxu0
        %v448 = vadd.f32 %v325, %v447
        %v449 = vpop.f32.mrf.mxu0
        %v450 = vadd.f32 %v325, %v449
        %451 = vmatmul.bf16.gmra.mxu0 %v386
        %v452 = vpop.f32.mrf.mxu0
        %v453 = vadd.f32 %v325, %v452
        %v454 = vpop.f32.mrf.mxu0
        %v455 = vadd.f32 %v325, %v454
        %456 = vmatmul.bf16.gmra.mxu0 %v389
        %v457 = vpop.f32.mrf.mxu0
        %v458 = vadd.f32 %v325, %v457
        %v459 = vpop.f32.mrf.mxu0
        %v460 = vadd.f32 %v325, %v459
        %461 = vmatmul.bf16.gmra.mxu0 %v392
        %v462 = vpop.f32.mrf.mxu0
        %v463 = vadd.f32 %v325, %v462
        %v464 = vpop.f32.mrf.mxu0
        %v465 = vadd.f32 %v325, %v464
        %466 = vmatmul.bf16.gmra.mxu0 %v395
        %v467 = vpop.f32.mrf.mxu0
        %v468 = vadd.f32 %v325, %v467
        %v469 = vpop.f32.mrf.mxu0
        %v470 = vadd.f32 %v325, %v469
        %471 = vmatmul.bf16.gmra.mxu0 %v398
        %v472 = vpop.f32.mrf.mxu0
        %v473 = vadd.f32 %v325, %v472
        %v474 = vpop.f32.mrf.mxu0
        %v475 = vadd.f32 %v325, %v474
        %476 = vmatmul.bf16.gmra.mxu0 %v401
        %v477 = vpop.f32.mrf.mxu0
        %v478 = vadd.f32 %v325, %v477
        %v479 = vpop.f32.mrf.mxu0
        %v480 = vadd.f32 %v325, %v479
        %481 = vmatmul.bf16.gmra.mxu0 %v404
        %v482 = vpop.f32.mrf.mxu0
        %v483 = vadd.f32 %v325, %v482
        %v484 = vpop.f32.mrf.mxu0
        %v485 = vadd.f32 %v325, %v484
        %486 = vmatmul.bf16.gmra.mxu0 %v407
        %v487 = vpop.f32.mrf.mxu0
        %v488 = vadd.f32 %v325, %v487
        %v489 = vpop.f32.mrf.mxu0
        %v490 = vadd.f32 %v325, %v489
        %491 = vmatmul.bf16.gmra.mxu0 %v410
        %v492 = vpop.f32.mrf.mxu0
        %v493 = vadd.f32 %v325, %v492
        %v494 = vpop.f32.mrf.mxu0
        %v495 = vadd.f32 %v325, %v494
        %496 = vmatmul.bf16.gmra.mxu0 %v413
        %v497 = vpop.f32.mrf.mxu0
        %v498 = vadd.f32 %v325, %v497
        %v499 = vpop.f32.mrf.mxu0
        %v500 = vadd.f32 %v325, %v499
        %501 = vmatmul.bf16.gmra.mxu0 %v416
        %v502 = vpop.f32.mrf.mxu0
        %v503 = vadd.f32 %v325, %v502
        %v504 = vpop.f32.mrf.mxu0
        %v505 = vadd.f32 %v325, %v504
        %506 = vdwg.mxu0
        %507 = vmatpush.bf16.msra.mxu0 0
        %508 = vmatpush.bf16.msra.mxu0 0
        %509 = vmatpush.bf16.msra.mxu0 0
        %510 = vmatpush.bf16.msra.mxu0 0
        %511 = vmatpush.bf16.msra.mxu0 %v360
        %512 = vmatpush.bf16.msra.mxu0 %v358
        %513 = vmatpush.bf16.msra.mxu0 %v356
        %514 = vmatpush.bf16.msra.mxu0 %v354
        %515 = vmatmul.bf16.gmra.mxu0 %v371
        %v516 = vpop.f32.mrf.mxu0
        %v517 = vadd.f32 %v326, %v516
        %v518 = vpop.f32.mrf.mxu0
        %v519 = vadd.f32 %v326, %v518
        %520 = vmatmul.bf16.gmra.mxu0 %v374
        %v521 = vpop.f32.mrf.mxu0
        %v522 = vadd.f32 %v326, %v521
        %v523 = vpop.f32.mrf.mxu0
        %v524 = vadd.f32 %v326, %v523
        %525 = vmatmul.bf16.gmra.mxu0 %v377
        %v526 = vpop.f32.mrf.mxu0
        %v527 = vadd.f32 %v326, %v526
        %v528 = vpop.f32.mrf.mxu0
        %v529 = vadd.f32 %v326, %v528
        %530 = vmatmul.bf16.gmra.mxu0 %v380
        %v531 = vpop.f32.mrf.mxu0
        %v532 = vadd.f32 %v326, %v531
        %v533 = vpop.f32.mrf.mxu0
        %v534 = vadd.f32 %v326, %v533
        %535 = vmatmul.bf16.gmra.mxu0 %v383
        %v536 = vpop.f32.mrf.mxu0
        %v537 = vadd.f32 %v326, %v536
        %v538 = vpop.f32.mrf.mxu0
        %v539 = vadd.f32 %v326, %v538
        %540 = vmatmul.bf16.gmra.mxu0 %v386
        %v541 = vpop.f32.mrf.mxu0
        %v542 = vadd.f32 %v326, %v541
        %v543 = vpop.f32.mrf.mxu0
        %v544 = vadd.f32 %v326, %v543
        %545 = vmatmul.bf16.gmra.mxu0 %v389
        %v546 = vpop.f32.mrf.mxu0
        %v547 = vadd.f32 %v326, %v546
        %v548 = vpop.f32.mrf.mxu0
        %v549 = vadd.f32 %v326, %v548
        %550 = vmatmul.bf16.gmra.mxu0 %v392
        %v551 = vpop.f32.mrf.mxu0
        %v552 = vadd.f32 %v326, %v551
        %v553 = vpop.f32.mrf.mxu0
        %v554 = vadd.f32 %v326, %v553
        %555 = vmatmul.bf16.gmra.mxu0 %v395
        %v556 = vpop.f32.mrf.mxu0
        %v557 = vadd.f32 %v326, %v556
        %v558 = vpop.f32.mrf.mxu0
        %v559 = vadd.f32 %v326, %v558
        %560 = vmatmul.bf16.gmra.mxu0 %v398
        %v561 = vpop.f32.mrf.mxu0
        %v562 = vadd.f32 %v326, %v561
        %v563 = vpop.f32.mrf.mxu0
        %v564 = vadd.f32 %v326, %v563
        %565 = vmatmul.bf16.gmra.mxu0 %v401
        %v566 = vpop.f32.mrf.mxu0
        %v567 = vadd.f32 %v326, %v566
        %v568 = vpop.f32.mrf.mxu0
        %v569 = vadd.f32 %v326, %v568
        %570 = vmatmul.bf16.gmra.mxu0 %v404
        %v571 = vpop.f32.mrf.mxu0
        %v572 = vadd.f32 %v326, %v571
        %v573 = vpop.f32.mrf.mxu0
        %v574 = vadd.f32 %v326, %v573
        %575 = vmatmul.bf16.gmra.mxu0 %v407
        %v576 = vpop.f32.mrf.mxu0
        %v577 = vadd.f32 %v326, %v576
        %v578 = vpop.f32.mrf.mxu0
        %v579 = vadd.f32 %v326, %v578
        %580 = vmatmul.bf16.gmra.mxu0 %v410
        %v581 = vpop.f32.mrf.mxu0
        %v582 = vadd.f32 %v326, %v581
        %v583 = vpop.f32.mrf.mxu0
        %v584 = vadd.f32 %v326, %v583
        %585 = vmatmul.bf16.gmra.mxu0 %v413
        %v586 = vpop.f32.mrf.mxu0
        %v587 = vadd.f32 %v326, %v586
        %v588 = vpop.f32.mrf.mxu0
        %v589 = vadd.f32 %v326, %v588
        %590 = vmatmul.bf16.gmra.mxu0 %v416
        %v591 = vpop.f32.mrf.mxu0
        %v592 = vadd.f32 %v326, %v591
        %v593 = vpop.f32.mrf.mxu0
        %v594 = vadd.f32 %v326, %v593
        %595 = vdwg.mxu0
        %v596 = vmax.f32 %v428, 0.0
        %v597 = vmax.f32 %v517, 0.0
        %v598 = vmax.f32 %v430, 0.0
        %v599 = vmax.f32 %v519, 0.0
        %v600 = vmax.f32 %v433, 0.0
        %v601 = vmax.f32 %v522, 0.0
        %v602 = vmax.f32 %v435, 0.0
        %v603 = vmax.f32 %v524, 0.0
        %v604 = vmax.f32 %v438, 0.0
        %v605 = vmax.f32 %v527, 0.0
        %v606 = vmax.f32 %v440, 0.0
        %v607 = vmax.f32 %v529, 0.0
        %v608 = vmax.f32 %v443, 0.0
        %v609 = vmax.f32 %v532, 0.0
        %v610 = vmax.f32 %v445, 0.0
        %v611 = vmax.f32 %v534, 0.0
        %v612 = vmax.f32 %v448, 0.0
        %v613 = vmax.f32 %v537, 0.0
        %v614 = vmax.f32 %v450, 0.0
        %v615 = vmax.f32 %v539, 0.0
        %v616 = vmax.f32 %v453, 0.0
        %v617 = vmax.f32 %v542, 0.0
        %v618 = vmax.f32 %v455, 0.0
        %v619 = vmax.f32 %v544, 0.0
        %v620 = vmax.f32 %v458, 0.0
        %v621 = vmax.f32 %v547, 0.0
        %v622 = vmax.f32 %v460, 0.0
        %v623 = vmax.f32 %v549, 0.0
        %v624 = vmax.f32 %v463, 0.0
        %v625 = vmax.f32 %v552, 0.0
        %v626 = vmax.f32 %v465, 0.0
        %v627 = vmax.f32 %v554, 0.0
        %v628 = vmax.f32 %v468, 0.0
        %v629 = vmax.f32 %v557, 0.0
        %v630 = vmax.f32 %v470, 0.0
        %v631 = vmax.f32 %v559, 0.0
        %v632 = vmax.f32 %v473, 0.0
        %v633 = vmax.f32 %v562, 0.0
        %v634 = vmax.f32 %v475, 0.0
        %v635 = vmax.f32 %v564, 0.0
        %v636 = vmax.f32 %v478, 0.0
        %v637 = vmax.f32 %v567, 0.0
        %v638 = vmax.f32 %v480, 0.0
        %v639 = vmax.f32 %v569, 0.0
        %v640 = vmax.f32 %v483, 0.0
        %v641 = vmax.f32 %v572, 0.0
        %v642 = vmax.f32 %v485, 0.0
        %v643 = vmax.f32 %v574, 0.0
        %v644 = vmax.f32 %v488, 0.0
        %v645 = vmax.f32 %v577, 0.0
        %v646 = vmax.f32 %v490, 0.0
        %v647 = vmax.f32 %v579, 0.0
        %v648 = vmax.f32 %v493, 0.0
        %v649 = vmax.f32 %v582, 0.0
        %v650 = vmax.f32 %v495, 0.0
        %v651 = vmax.f32 %v584, 0.0
        %v652 = vmax.f32 %v498, 0.0
        %v653 = vmax.f32 %v587, 0.0
        %v654 = vmax.f32 %v500, 0.0
        %v655 = vmax.f32 %v589, 0.0
        %v656 = vmax.f32 %v503, 0.0
        %v657 = vmax.f32 %v592, 0.0
        %v658 = vmax.f32 %v505, 0.0
        %v659 = vmax.f32 %v594, 0.0
        %v660 = vpack.c.bf16 %v598, %v596
        %v661 = vpack.c.bf16 %v599, %v597
        %v662 = vpack.c.bf16 %v602, %v600
        %v663 = vpack.c.bf16 %v603, %v601
        %v664 = vpack.c.bf16 %v606, %v604
        %v665 = vpack.c.bf16 %v607, %v605
        %v666 = vpack.c.bf16 %v610, %v608
        %v667 = vpack.c.bf16 %v611, %v609
        %v668 = vpack.c.bf16 %v614, %v612
        %v669 = vpack.c.bf16 %v615, %v613
        %v670 = vpack.c.bf16 %v618, %v616
        %v671 = vpack.c.bf16 %v619, %v617
        %v672 = vpack.c.bf16 %v622, %v620
        %v673 = vpack.c.bf16 %v623, %v621
        %v674 = vpack.c.bf16 %v626, %v624
        %v675 = vpack.c.bf16 %v627, %v625
        %v676 = vpack.c.bf16 %v630, %v628
        %v677 = vpack.c.bf16 %v631, %v629
        %v678 = vpack.c.bf16 %v634, %v632
        %v679 = vpack.c.bf16 %v635, %v633
        %v680 = vpack.c.bf16 %v638, %v636
        %v681 = vpack.c.bf16 %v639, %v637
        %v682 = vpack.c.bf16 %v642, %v640
        %v683 = vpack.c.bf16 %v643, %v641
        %v684 = vpack.c.bf16 %v646, %v644
        %v685 = vpack.c.bf16 %v647, %v645
        %v686 = vpack.c.bf16 %v650, %v648
        %v687 = vpack.c.bf16 %v651, %v649
        %v688 = vpack.c.bf16 %v654, %v652
        %v689 = vpack.c.bf16 %v655, %v653
        %v690 = vpack.c.bf16 %v658, %v656
        %v691 = vpack.c.bf16 %v659, %v657
        %v692 = vperm.slane %v321, 0
        %v725 = vunpack.c.l.b16 %v256
        %v726 = vunpack.c.l.b16 %v257
        %v727 = vunpack.c.l.b16 %v258
        %v728 = vunpack.c.l.b16 %v259
        %v729 = vunpack.c.l.b16 %v260
        %v730 = vunpack.c.l.b16 %v261
        %v731 = vunpack.c.l.b16 %v262
        %v732 = vunpack.c.l.b16 %v263
        %v733 = vunpack.c.l.b16 %v264
        %v734 = vunpack.c.l.b16 %v265
        %v735 = vunpack.c.l.b16 %v266
        %v736 = vunpack.c.l.b16 %v267
        %v737 = vunpack.c.l.b16 %v268
        %v738 = vunpack.c.l.b16 %v269
        %v739 = vunpack.c.l.b16 %v270
        %v740 = vunpack.c.l.b16 %v271
        %v741 = vunpack.c.l.b16 %v272
        %v742 = vunpack.c.l.b16 %v273
        %v743 = vunpack.c.l.b16 %v274
        %v744 = vunpack.c.l.b16 %v275
        %v745 = vunpack.c.l.b16 %v276
        %v746 = vunpack.c.l.b16 %v277
        %v747 = vunpack.c.l.b16 %v278
        %v748 = vunpack.c.l.b16 %v279
        %v749 = vunpack.c.l.b16 %v280
        %v750 = vunpack.c.l.b16 %v281
        %v751 = vunpack.c.l.b16 %v282
        %v752 = vunpack.c.l.b16 %v283
        %v753 = vunpack.c.l.b16 %v284
        %v754 = vunpack.c.l.b16 %v285
        %v755 = vunpack.c.l.b16 %v286
        %v756 = vunpack.c.l.b16 %v287
        %v757 = vpack.c.b16 %v726, %v725
        %v758 = vpack.c.b16 %v728, %v727
        %v759 = vpack.c.b16 %v730, %v729
        %v760 = vpack.c.b16 %v732, %v731
        %v761 = vpack.c.b16 %v734, %v733
        %v762 = vpack.c.b16 %v736, %v735
        %v763 = vpack.c.b16 %v738, %v737
        %v764 = vpack.c.b16 %v740, %v739
        %v765 = vpack.c.b16 %v742, %v741
        %v766 = vpack.c.b16 %v744, %v743
        %v767 = vpack.c.b16 %v746, %v745
        %v768 = vpack.c.b16 %v748, %v747
        %v769 = vpack.c.b16 %v750, %v749
        %v770 = vpack.c.b16 %v752, %v751
        %v771 = vpack.c.b16 %v754, %v753
        %v772 = vpack.c.b16 %v756, %v755
        %789 = vmatpush.bf16.msra.mxu0 %v764
        %790 = vmatpush.bf16.msra.mxu0 %v763
        %791 = vmatpush.bf16.msra.mxu0 %v762
        %792 = vmatpush.bf16.msra.mxu0 %v761
        %793 = vmatpush.bf16.msra.mxu0 %v760
        %794 = vmatpush.bf16.msra.mxu0 %v759
        %795 = vmatpush.bf16.msra.mxu0 %v758
        %796 = vmatpush.bf16.msra.mxu0 %v757
        %797 = vmatmul.bf16.gmra.mxu0 %v660
        %v798 = vpop.f32.mrf.mxu0
        %v799 = vadd.f32 %v692, %v798
        %v800 = vpop.f32.mrf.mxu0
        %v801 = vadd.f32 %v692, %v800
        %802 = vmatmul.bf16.gmra.mxu0 %v662
        %v803 = vpop.f32.mrf.mxu0
        %v804 = vadd.f32 %v692, %v803
        %v805 = vpop.f32.mrf.mxu0
        %v806 = vadd.f32 %v692, %v805
        %807 = vmatmul.bf16.gmra.mxu0 %v664
        %v808 = vpop.f32.mrf.mxu0
        %v809 = vadd.f32 %v692, %v808
        %v810 = vpop.f32.mrf.mxu0
        %v811 = vadd.f32 %v692, %v810
        %812 = vmatmul.bf16.gmra.mxu0 %v666
        %v813 = vpop.f32.mrf.mxu0
        %v814 = vadd.f32 %v692, %v813
        %v815 = vpop.f32.mrf.mxu0
        %v816 = vadd.f32 %v692, %v815
        %817 = vmatmul.bf16.gmra.mxu0 %v668
        %v818 = vpop.f32.mrf.mxu0
        %v819 = vadd.f32 %v692, %v818
        %v820 = vpop.f32.mrf.mxu0
        %v821 = vadd.f32 %v692, %v820
        %822 = vmatmul.bf16.gmra.mxu0 %v670
        %v823 = vpop.f32.mrf.mxu0
        %v824 = vadd.f32 %v692, %v823
        %v825 = vpop.f32.mrf.mxu0
        %v826 = vadd.f32 %v692, %v825
        %827 = vmatmul.bf16.gmra.mxu0 %v672
        %v828 = vpop.f32.mrf.mxu0
        %v829 = vadd.f32 %v692, %v828
        %v830 = vpop.f32.mrf.mxu0
        %v831 = vadd.f32 %v692, %v830
        %832 = vmatmul.bf16.gmra.mxu0 %v674
        %v833 = vpop.f32.mrf.mxu0
        %v834 = vadd.f32 %v692, %v833
        %v835 = vpop.f32.mrf.mxu0
        %v836 = vadd.f32 %v692, %v835
        %837 = vmatmul.bf16.gmra.mxu0 %v676
        %v838 = vpop.f32.mrf.mxu0
        %v839 = vadd.f32 %v692, %v838
        %v840 = vpop.f32.mrf.mxu0
        %v841 = vadd.f32 %v692, %v840
        %842 = vmatmul.bf16.gmra.mxu0 %v678
        %v843 = vpop.f32.mrf.mxu0
        %v844 = vadd.f32 %v692, %v843
        %v845 = vpop.f32.mrf.mxu0
        %v846 = vadd.f32 %v692, %v845
        %847 = vmatmul.bf16.gmra.mxu0 %v680
        %v848 = vpop.f32.mrf.mxu0
        %v849 = vadd.f32 %v692, %v848
        %v850 = vpop.f32.mrf.mxu0
        %v851 = vadd.f32 %v692, %v850
        %852 = vmatmul.bf16.gmra.mxu0 %v682
        %v853 = vpop.f32.mrf.mxu0
        %v854 = vadd.f32 %v692, %v853
        %v855 = vpop.f32.mrf.mxu0
        %v856 = vadd.f32 %v692, %v855
        %857 = vmatmul.bf16.gmra.mxu0 %v684
        %v858 = vpop.f32.mrf.mxu0
        %v859 = vadd.f32 %v692, %v858
        %v860 = vpop.f32.mrf.mxu0
        %v861 = vadd.f32 %v692, %v860
        %862 = vmatmul.bf16.gmra.mxu0 %v686
        %v863 = vpop.f32.mrf.mxu0
        %v864 = vadd.f32 %v692, %v863
        %v865 = vpop.f32.mrf.mxu0
        %v866 = vadd.f32 %v692, %v865
        %867 = vmatmul.bf16.gmra.mxu0 %v688
        %v868 = vpop.f32.mrf.mxu0
        %v869 = vadd.f32 %v692, %v868
        %v870 = vpop.f32.mrf.mxu0
        %v871 = vadd.f32 %v692, %v870
        %872 = vmatmul.bf16.gmra.mxu0 %v690
        %v873 = vpop.f32.mrf.mxu0
        %v874 = vadd.f32 %v692, %v873
        %v875 = vpop.f32.mrf.mxu0
        %v876 = vadd.f32 %v692, %v875
        %877 = vdwg.mxu0
        %878 = vmatpush.bf16.msra.mxu0 %v772
        %879 = vmatpush.bf16.msra.mxu0 %v771
        %880 = vmatpush.bf16.msra.mxu0 %v770
        %881 = vmatpush.bf16.msra.mxu0 %v769
        %882 = vmatpush.bf16.msra.mxu0 %v768
        %883 = vmatpush.bf16.msra.mxu0 %v767
        %884 = vmatpush.bf16.msra.mxu0 %v766
        %885 = vmatpush.bf16.msra.mxu0 %v765
        %886 = vmatmul.bf16.gmra.mxu0 %v661
        %v887 = vpop.f32.mrf.mxu0
        %v888 = vadd.f32 %v799, %v887
        %v889 = vpop.f32.mrf.mxu0
        %v890 = vadd.f32 %v801, %v889
        %891 = vmatmul.bf16.gmra.mxu0 %v663
        %v892 = vpop.f32.mrf.mxu0
        %v893 = vadd.f32 %v804, %v892
        %v894 = vpop.f32.mrf.mxu0
        %v895 = vadd.f32 %v806, %v894
        %896 = vmatmul.bf16.gmra.mxu0 %v665
        %v897 = vpop.f32.mrf.mxu0
        %v898 = vadd.f32 %v809, %v897
        %v899 = vpop.f32.mrf.mxu0
        %v900 = vadd.f32 %v811, %v899
        %901 = vmatmul.bf16.gmra.mxu0 %v667
        %v902 = vpop.f32.mrf.mxu0
        %v903 = vadd.f32 %v814, %v902
        %v904 = vpop.f32.mrf.mxu0
        %v905 = vadd.f32 %v816, %v904
        %906 = vmatmul.bf16.gmra.mxu0 %v669
        %v907 = vpop.f32.mrf.mxu0
        %v908 = vadd.f32 %v819, %v907
        %v909 = vpop.f32.mrf.mxu0
        %v910 = vadd.f32 %v821, %v909
        %911 = vmatmul.bf16.gmra.mxu0 %v671
        %v912 = vpop.f32.mrf.mxu0
        %v913 = vadd.f32 %v824, %v912
        %v914 = vpop.f32.mrf.mxu0
        %v915 = vadd.f32 %v826, %v914
        %916 = vmatmul.bf16.gmra.mxu0 %v673
        %v917 = vpop.f32.mrf.mxu0
        %v918 = vadd.f32 %v829, %v917
        %v919 = vpop.f32.mrf.mxu0
        %v920 = vadd.f32 %v831, %v919
        %921 = vmatmul.bf16.gmra.mxu0 %v675
        %v922 = vpop.f32.mrf.mxu0
        %v923 = vadd.f32 %v834, %v922
        %v924 = vpop.f32.mrf.mxu0
        %v925 = vadd.f32 %v836, %v924
        %926 = vmatmul.bf16.gmra.mxu0 %v677
        %v927 = vpop.f32.mrf.mxu0
        %v928 = vadd.f32 %v839, %v927
        %v929 = vpop.f32.mrf.mxu0
        %v930 = vadd.f32 %v841, %v929
        %931 = vmatmul.bf16.gmra.mxu0 %v679
        %v932 = vpop.f32.mrf.mxu0
        %v933 = vadd.f32 %v844, %v932
        %v934 = vpop.f32.mrf.mxu0
        %v935 = vadd.f32 %v846, %v934
        %936 = vmatmul.bf16.gmra.mxu0 %v681
        %v937 = vpop.f32.mrf.mxu0
        %v938 = vadd.f32 %v849, %v937
        %v939 = vpop.f32.mrf.mxu0
        %v940 = vadd.f32 %v851, %v939
        %941 = vmatmul.bf16.gmra.mxu0 %v683
        %v942 = vpop.f32.mrf.mxu0
        %v943 = vadd.f32 %v854, %v942
        %v944 = vpop.f32.mrf.mxu0
        %v945 = vadd.f32 %v856, %v944
        %946 = vmatmul.bf16.gmra.mxu0 %v685
        %v947 = vpop.f32.mrf.mxu0
        %v948 = vadd.f32 %v859, %v947
        %v949 = vpop.f32.mrf.mxu0
        %v950 = vadd.f32 %v861, %v949
        %951 = vmatmul.bf16.gmra.mxu0 %v687
        %v952 = vpop.f32.mrf.mxu0
        %v953 = vadd.f32 %v864, %v952
        %v954 = vpop.f32.mrf.mxu0
        %v955 = vadd.f32 %v866, %v954
        %956 = vmatmul.bf16.gmra.mxu0 %v689
        %v957 = vpop.f32.mrf.mxu0
        %v958 = vadd.f32 %v869, %v957
        %v959 = vpop.f32.mrf.mxu0
        %v960 = vadd.f32 %v871, %v959
        %961 = vmatmul.bf16.gmra.mxu0 %v691
        %v962 = vpop.f32.mrf.mxu0
        %v963 = vadd.f32 %v874, %v962
        %v964 = vpop.f32.mrf.mxu0
        %v965 = vadd.f32 %v876, %v964
        %966 = vdwg.mxu0
        %v967 = vmax.f32 %v888, 0.0
        %v968 = vmax.f32 %v890, 0.0
        %v969 = vmax.f32 %v893, 0.0
        %v970 = vmax.f32 %v895, 0.0
        %v971 = vmax.f32 %v898, 0.0
        %v972 = vmax.f32 %v900, 0.0
        %v973 = vmax.f32 %v903, 0.0
        %v974 = vmax.f32 %v905, 0.0
        %v975 = vmax.f32 %v908, 0.0
        %v976 = vmax.f32 %v910, 0.0
        %v977 = vmax.f32 %v913, 0.0
        %v978 = vmax.f32 %v915, 0.0
        %v979 = vmax.f32 %v918, 0.0
        %v980 = vmax.f32 %v920, 0.0
        %v981 = vmax.f32 %v923, 0.0
        %v982 = vmax.f32 %v925, 0.0
        %v983 = vmax.f32 %v928, 0.0
        %v984 = vmax.f32 %v930, 0.0
        %v985 = vmax.f32 %v933, 0.0
        %v986 = vmax.f32 %v935, 0.0
        %v987 = vmax.f32 %v938, 0.0
        %v988 = vmax.f32 %v940, 0.0
        %v989 = vmax.f32 %v943, 0.0
        %v990 = vmax.f32 %v945, 0.0
        %v991 = vmax.f32 %v948, 0.0
        %v992 = vmax.f32 %v950, 0.0
        %v993 = vmax.f32 %v953, 0.0
        %v994 = vmax.f32 %v955, 0.0
        %v995 = vmax.f32 %v958, 0.0
        %v996 = vmax.f32 %v960, 0.0
        %v997 = vmax.f32 %v963, 0.0
        %v998 = vmax.f32 %v965, 0.0
        %v999 = vpack.c.bf16 %v968, %v967
        %v1000 = vpack.c.bf16 %v970, %v969
        %v1001 = vpack.c.bf16 %v972, %v971
        %v1002 = vpack.c.bf16 %v974, %v973
        %v1003 = vpack.c.bf16 %v976, %v975
        %v1004 = vpack.c.bf16 %v978, %v977
        %v1005 = vpack.c.bf16 %v980, %v979
        %v1006 = vpack.c.bf16 %v982, %v981
        %v1007 = vpack.c.bf16 %v984, %v983
        %v1008 = vpack.c.bf16 %v986, %v985
        %v1009 = vpack.c.bf16 %v988, %v987
        %v1010 = vpack.c.bf16 %v990, %v989
        %v1011 = vpack.c.bf16 %v992, %v991
        %v1012 = vpack.c.bf16 %v994, %v993
        %v1013 = vpack.c.bf16 %v996, %v995
        %v1014 = vpack.c.bf16 %v998, %v997
        %v1015 = vperm.slane %v322, 0
        %v1032 = vunpack.c.l.b16 %v288
        %v1033 = vunpack.c.l.b16 %v289
        %v1034 = vunpack.c.l.b16 %v290
        %v1035 = vunpack.c.l.b16 %v291
        %v1036 = vunpack.c.l.b16 %v292
        %v1037 = vunpack.c.l.b16 %v293
        %v1038 = vunpack.c.l.b16 %v294
        %v1039 = vunpack.c.l.b16 %v295
        %v1040 = vunpack.c.l.b16 %v296
        %v1041 = vunpack.c.l.b16 %v297
        %v1042 = vunpack.c.l.b16 %v298
        %v1043 = vunpack.c.l.b16 %v299
        %v1044 = vunpack.c.l.b16 %v300
        %v1045 = vunpack.c.l.b16 %v301
        %v1046 = vunpack.c.l.b16 %v302
        %v1047 = vunpack.c.l.b16 %v303
        %v1048 = vpack.c.b16 %v1033, %v1032
        %v1049 = vpack.c.b16 %v1035, %v1034
        %v1050 = vpack.c.b16 %v1037, %v1036
        %v1051 = vpack.c.b16 %v1039, %v1038
        %v1052 = vpack.c.b16 %v1041, %v1040
        %v1053 = vpack.c.b16 %v1043, %v1042
        %v1054 = vpack.c.b16 %v1045, %v1044
        %v1055 = vpack.c.b16 %v1047, %v1046
        %1064 = vmatpush.bf16.msra.mxu0 %v1055
        %1065 = vmatpush.bf16.msra.mxu0 %v1054
        %1066 = vmatpush.bf16.msra.mxu0 %v1053
        %1067 = vmatpush.bf16.msra.mxu0 %v1052
        %1068 = vmatpush.bf16.msra.mxu0 %v1051
        %1069 = vmatpush.bf16.msra.mxu0 %v1050
        %1070 = vmatpush.bf16.msra.mxu0 %v1049
        %1071 = vmatpush.bf16.msra.mxu0 %v1048
        %1072 = vmatmul.bf16.gmra.mxu0 %v999
        %v1073 = vpop.f32.mrf.mxu0
        %v1074 = vadd.f32 %v1015, %v1073
        %v1075 = vpop.f32.mrf.mxu0
        %v1076 = vadd.f32 %v1015, %v1075
        %1077 = vmatmul.bf16.gmra.mxu0 %v1000
        %v1078 = vpop.f32.mrf.mxu0
        %v1079 = vadd.f32 %v1015, %v1078
        %v1080 = vpop.f32.mrf.mxu0
        %v1081 = vadd.f32 %v1015, %v1080
        %1082 = vmatmul.bf16.gmra.mxu0 %v1001
        %v1083 = vpop.f32.mrf.mxu0
        %v1084 = vadd.f32 %v1015, %v1083
        %v1085 = vpop.f32.mrf.mxu0
        %v1086 = vadd.f32 %v1015, %v1085
        %1087 = vmatmul.bf16.gmra.mxu0 %v1002
        %v1088 = vpop.f32.mrf.mxu0
        %v1089 = vadd.f32 %v1015, %v1088
        %v1090 = vpop.f32.mrf.mxu0
        %v1091 = vadd.f32 %v1015, %v1090
        %1092 = vmatmul.bf16.gmra.mxu0 %v1003
        %v1093 = vpop.f32.mrf.mxu0
        %v1094 = vadd.f32 %v1015, %v1093
        %v1095 = vpop.f32.mrf.mxu0
        %v1096 = vadd.f32 %v1015, %v1095
        %1097 = vmatmul.bf16.gmra.mxu0 %v1004
        %v1098 = vpop.f32.mrf.mxu0
        %v1099 = vadd.f32 %v1015, %v1098
        %v1100 = vpop.f32.mrf.mxu0
        %v1101 = vadd.f32 %v1015, %v1100
        %1102 = vmatmul.bf16.gmra.mxu0 %v1005
        %v1103 = vpop.f32.mrf.mxu0
        %v1104 = vadd.f32 %v1015, %v1103
        %v1105 = vpop.f32.mrf.mxu0
        %v1106 = vadd.f32 %v1015, %v1105
        %1107 = vmatmul.bf16.gmra.mxu0 %v1006
        %v1108 = vpop.f32.mrf.mxu0
        %v1109 = vadd.f32 %v1015, %v1108
        %v1110 = vpop.f32.mrf.mxu0
        %v1111 = vadd.f32 %v1015, %v1110
        %1112 = vmatmul.bf16.gmra.mxu0 %v1007
        %v1113 = vpop.f32.mrf.mxu0
        %v1114 = vadd.f32 %v1015, %v1113
        %v1115 = vpop.f32.mrf.mxu0
        %v1116 = vadd.f32 %v1015, %v1115
        %1117 = vmatmul.bf16.gmra.mxu0 %v1008
        %v1118 = vpop.f32.mrf.mxu0
        %v1119 = vadd.f32 %v1015, %v1118
        %v1120 = vpop.f32.mrf.mxu0
        %v1121 = vadd.f32 %v1015, %v1120
        %1122 = vmatmul.bf16.gmra.mxu0 %v1009
        %v1123 = vpop.f32.mrf.mxu0
        %v1124 = vadd.f32 %v1015, %v1123
        %v1125 = vpop.f32.mrf.mxu0
        %v1126 = vadd.f32 %v1015, %v1125
        %1127 = vmatmul.bf16.gmra.mxu0 %v1010
        %v1128 = vpop.f32.mrf.mxu0
        %v1129 = vadd.f32 %v1015, %v1128
        %v1130 = vpop.f32.mrf.mxu0
        %v1131 = vadd.f32 %v1015, %v1130
        %1132 = vmatmul.bf16.gmra.mxu0 %v1011
        %v1133 = vpop.f32.mrf.mxu0
        %v1134 = vadd.f32 %v1015, %v1133
        %v1135 = vpop.f32.mrf.mxu0
        %v1136 = vadd.f32 %v1015, %v1135
        %1137 = vmatmul.bf16.gmra.mxu0 %v1012
        %v1138 = vpop.f32.mrf.mxu0
        %v1139 = vadd.f32 %v1015, %v1138
        %v1140 = vpop.f32.mrf.mxu0
        %v1141 = vadd.f32 %v1015, %v1140
        %1142 = vmatmul.bf16.gmra.mxu0 %v1013
        %v1143 = vpop.f32.mrf.mxu0
        %v1144 = vadd.f32 %v1015, %v1143
        %v1145 = vpop.f32.mrf.mxu0
        %v1146 = vadd.f32 %v1015, %v1145
        %1147 = vmatmul.bf16.gmra.mxu0 %v1014
        %v1148 = vpop.f32.mrf.mxu0
        %v1149 = vadd.f32 %v1015, %v1148
        %v1150 = vpop.f32.mrf.mxu0
        %v1151 = vadd.f32 %v1015, %v1150
        %1152 = vdwg.mxu0
        %v1153 = vmax.f32 %v1074, 0.0
        %v1154 = vmax.f32 %v1076, 0.0
        %v1155 = vmax.f32 %v1079, 0.0
        %v1156 = vmax.f32 %v1081, 0.0
        %v1157 = vmax.f32 %v1084, 0.0
        %v1158 = vmax.f32 %v1086, 0.0
        %v1159 = vmax.f32 %v1089, 0.0
        %v1160 = vmax.f32 %v1091, 0.0
        %v1161 = vmax.f32 %v1094, 0.0
        %v1162 = vmax.f32 %v1096, 0.0
        %v1163 = vmax.f32 %v1099, 0.0
        %v1164 = vmax.f32 %v1101, 0.0
        %v1165 = vmax.f32 %v1104, 0.0
        %v1166 = vmax.f32 %v1106, 0.0
        %v1167 = vmax.f32 %v1109, 0.0
        %v1168 = vmax.f32 %v1111, 0.0
        %v1169 = vmax.f32 %v1114, 0.0
        %v1170 = vmax.f32 %v1116, 0.0
        %v1171 = vmax.f32 %v1119, 0.0
        %v1172 = vmax.f32 %v1121, 0.0
        %v1173 = vmax.f32 %v1124, 0.0
        %v1174 = vmax.f32 %v1126, 0.0
        %v1175 = vmax.f32 %v1129, 0.0
        %v1176 = vmax.f32 %v1131, 0.0
        %v1177 = vmax.f32 %v1134, 0.0
        %v1178 = vmax.f32 %v1136, 0.0
        %v1179 = vmax.f32 %v1139, 0.0
        %v1180 = vmax.f32 %v1141, 0.0
        %v1181 = vmax.f32 %v1144, 0.0
        %v1182 = vmax.f32 %v1146, 0.0
        %v1183 = vmax.f32 %v1149, 0.0
        %v1184 = vmax.f32 %v1151, 0.0
        %v1185 = vpack.c.bf16 %v1154, %v1153
        %v1186 = vpack.c.bf16 %v1156, %v1155
        %v1187 = vpack.c.bf16 %v1158, %v1157
        %v1188 = vpack.c.bf16 %v1160, %v1159
        %v1189 = vpack.c.bf16 %v1162, %v1161
        %v1190 = vpack.c.bf16 %v1164, %v1163
        %v1191 = vpack.c.bf16 %v1166, %v1165
        %v1192 = vpack.c.bf16 %v1168, %v1167
        %v1193 = vpack.c.bf16 %v1170, %v1169
        %v1194 = vpack.c.bf16 %v1172, %v1171
        %v1195 = vpack.c.bf16 %v1174, %v1173
        %v1196 = vpack.c.bf16 %v1176, %v1175
        %v1197 = vpack.c.bf16 %v1178, %v1177
        %v1198 = vpack.c.bf16 %v1180, %v1179
        %v1199 = vpack.c.bf16 %v1182, %v1181
        %v1200 = vpack.c.bf16 %v1184, %v1183
        %v1201 = vperm.slane %v323, 0
        %v1218 = vunpack.c.l.b16 %v304
        %v1219 = vunpack.c.l.b16 %v305
        %v1220 = vunpack.c.l.b16 %v306
        %v1221 = vunpack.c.l.b16 %v307
        %v1222 = vunpack.c.l.b16 %v308
        %v1223 = vunpack.c.l.b16 %v309
        %v1224 = vunpack.c.l.b16 %v310
        %v1225 = vunpack.c.l.b16 %v311
        %v1226 = vunpack.c.l.b16 %v312
        %v1227 = vunpack.c.l.b16 %v313
        %v1228 = vunpack.c.l.b16 %v314
        %v1229 = vunpack.c.l.b16 %v315
        %v1230 = vunpack.c.l.b16 %v316
        %v1231 = vunpack.c.l.b16 %v317
        %v1232 = vunpack.c.l.b16 %v318
        %v1233 = vunpack.c.l.b16 %v319
        %v1234 = vpack.c.b16 %v1219, %v1218
        %v1235 = vpack.c.b16 %v1221, %v1220
        %v1236 = vpack.c.b16 %v1223, %v1222
        %v1237 = vpack.c.b16 %v1225, %v1224
        %v1238 = vpack.c.b16 %v1227, %v1226
        %v1239 = vpack.c.b16 %v1229, %v1228
        %v1240 = vpack.c.b16 %v1231, %v1230
        %v1241 = vpack.c.b16 %v1233, %v1232
        %1250 = vmatpush.bf16.msra.mxu0 %v1241
        %1251 = vmatpush.bf16.msra.mxu0 %v1240
        %1252 = vmatpush.bf16.msra.mxu0 %v1239
        %1253 = vmatpush.bf16.msra.mxu0 %v1238
        %1254 = vmatpush.bf16.msra.mxu0 %v1237
        %1255 = vmatpush.bf16.msra.mxu0 %v1236
        %1256 = vmatpush.bf16.msra.mxu0 %v1235
        %1257 = vmatpush.bf16.msra.mxu0 %v1234
        %1258 = vmatmul.bf16.gmra.mxu0 %v1185
        %v1259 = vpop.f32.mrf.mxu0
        %v1260 = vadd.f32 %v1201, %v1259
        %v1261 = vpop.f32.mrf.mxu0
        %v1262 = vadd.f32 %v1201, %v1261
        %1263 = vmatmul.bf16.gmra.mxu0 %v1186
        %v1264 = vpop.f32.mrf.mxu0
        %v1265 = vadd.f32 %v1201, %v1264
        %v1266 = vpop.f32.mrf.mxu0
        %v1267 = vadd.f32 %v1201, %v1266
        %1268 = vmatmul.bf16.gmra.mxu0 %v1187
        %v1269 = vpop.f32.mrf.mxu0
        %v1270 = vadd.f32 %v1201, %v1269
        %v1271 = vpop.f32.mrf.mxu0
        %v1272 = vadd.f32 %v1201, %v1271
        %1273 = vmatmul.bf16.gmra.mxu0 %v1188
        %v1274 = vpop.f32.mrf.mxu0
        %v1275 = vadd.f32 %v1201, %v1274
        %v1276 = vpop.f32.mrf.mxu0
        %v1277 = vadd.f32 %v1201, %v1276
        %1278 = vmatmul.bf16.gmra.mxu0 %v1189
        %v1279 = vpop.f32.mrf.mxu0
        %v1280 = vadd.f32 %v1201, %v1279
        %v1281 = vpop.f32.mrf.mxu0
        %v1282 = vadd.f32 %v1201, %v1281
        %1283 = vmatmul.bf16.gmra.mxu0 %v1190
        %v1284 = vpop.f32.mrf.mxu0
        %v1285 = vadd.f32 %v1201, %v1284
        %v1286 = vpop.f32.mrf.mxu0
        %v1287 = vadd.f32 %v1201, %v1286
        %1288 = vmatmul.bf16.gmra.mxu0 %v1191
        %v1289 = vpop.f32.mrf.mxu0
        %v1290 = vadd.f32 %v1201, %v1289
        %v1291 = vpop.f32.mrf.mxu0
        %v1292 = vadd.f32 %v1201, %v1291
        %1293 = vmatmul.bf16.gmra.mxu0 %v1192
        %v1294 = vpop.f32.mrf.mxu0
        %v1295 = vadd.f32 %v1201, %v1294
        %v1296 = vpop.f32.mrf.mxu0
        %v1297 = vadd.f32 %v1201, %v1296
        %1298 = vmatmul.bf16.gmra.mxu0 %v1193
        %v1299 = vpop.f32.mrf.mxu0
        %v1300 = vadd.f32 %v1201, %v1299
        %v1301 = vpop.f32.mrf.mxu0
        %v1302 = vadd.f32 %v1201, %v1301
        %1303 = vmatmul.bf16.gmra.mxu0 %v1194
        %v1304 = vpop.f32.mrf.mxu0
        %v1305 = vadd.f32 %v1201, %v1304
        %v1306 = vpop.f32.mrf.mxu0
        %v1307 = vadd.f32 %v1201, %v1306
        %1308 = vmatmul.bf16.gmra.mxu0 %v1195
        %v1309 = vpop.f32.mrf.mxu0
        %v1310 = vadd.f32 %v1201, %v1309
        %v1311 = vpop.f32.mrf.mxu0
        %v1312 = vadd.f32 %v1201, %v1311
        %1313 = vmatmul.bf16.gmra.mxu0 %v1196
        %v1314 = vpop.f32.mrf.mxu0
        %v1315 = vadd.f32 %v1201, %v1314
        %v1316 = vpop.f32.mrf.mxu0
        %v1317 = vadd.f32 %v1201, %v1316
        %1318 = vmatmul.bf16.gmra.mxu0 %v1197
        %v1319 = vpop.f32.mrf.mxu0
        %v1320 = vadd.f32 %v1201, %v1319
        %v1321 = vpop.f32.mrf.mxu0
        %v1322 = vadd.f32 %v1201, %v1321
        %1323 = vmatmul.bf16.gmra.mxu0 %v1198
        %v1324 = vpop.f32.mrf.mxu0
        %v1325 = vadd.f32 %v1201, %v1324
        %v1326 = vpop.f32.mrf.mxu0
        %v1327 = vadd.f32 %v1201, %v1326
        %1328 = vmatmul.bf16.gmra.mxu0 %v1199
        %v1329 = vpop.f32.mrf.mxu0
        %v1330 = vadd.f32 %v1201, %v1329
        %v1331 = vpop.f32.mrf.mxu0
        %v1332 = vadd.f32 %v1201, %v1331
        %1333 = vmatmul.bf16.gmra.mxu0 %v1200
        %v1334 = vpop.f32.mrf.mxu0
        %v1335 = vadd.f32 %v1201, %v1334
        %v1336 = vpop.f32.mrf.mxu0
        %v1337 = vadd.f32 %v1201, %v1336
        %1338 = vdwg.mxu0
        %v1339 = vpack.c.bf16 %v1260, %v1260
        %v1340 = vpack.c.bf16 %v1262, %v1262
        %v1341 = vpack.c.bf16 %v1265, %v1265
        %v1342 = vpack.c.bf16 %v1267, %v1267
        %v1343 = vpack.c.bf16 %v1270, %v1270
        %v1344 = vpack.c.bf16 %v1272, %v1272
        %v1345 = vpack.c.bf16 %v1275, %v1275
        %v1346 = vpack.c.bf16 %v1277, %v1277
        %v1347 = vpack.c.bf16 %v1280, %v1280
        %v1348 = vpack.c.bf16 %v1282, %v1282
        %v1349 = vpack.c.bf16 %v1285, %v1285
        %v1350 = vpack.c.bf16 %v1287, %v1287
        %v1351 = vpack.c.bf16 %v1290, %v1290
        %v1352 = vpack.c.bf16 %v1292, %v1292
        %v1353 = vpack.c.bf16 %v1295, %v1295
        %v1354 = vpack.c.bf16 %v1297, %v1297
        %v1355 = vpack.c.bf16 %v1300, %v1300
        %v1356 = vpack.c.bf16 %v1302, %v1302
        %v1357 = vpack.c.bf16 %v1305, %v1305
        %v1358 = vpack.c.bf16 %v1307, %v1307
        %v1359 = vpack.c.bf16 %v1310, %v1310
        %v1360 = vpack.c.bf16 %v1312, %v1312
        %v1361 = vpack.c.bf16 %v1315, %v1315
        %v1362 = vpack.c.bf16 %v1317, %v1317
        %v1363 = vpack.c.bf16 %v1320, %v1320
        %v1364 = vpack.c.bf16 %v1322, %v1322
        %v1365 = vpack.c.bf16 %v1325, %v1325
        %v1366 = vpack.c.bf16 %v1327, %v1327
        %v1367 = vpack.c.bf16 %v1330, %v1330
        %v1368 = vpack.c.bf16 %v1332, %v1332
        %v1369 = vpack.c.bf16 %v1335, %v1335
        %v1370 = vpack.c.bf16 %v1337, %v1337
        %1371 = vst [vmem:[%s191] sm:$0xf] %v1339
        %1372 = vst [vmem:[%s191 + $0x4] sm:$0xf] %v1340
        %1373 = vst [vmem:[%s191 + $0x8] sm:$0xf] %v1341
        %1374 = vst [vmem:[%s191 + $0xc] sm:$0xf] %v1342
        %1375 = vst [vmem:[%s191 + $0x10] sm:$0xf] %v1343
        %1376 = vst [vmem:[%s191 + $0x14] sm:$0xf] %v1344
        %1377 = vst [vmem:[%s191 + $0x18] sm:$0xf] %v1345
        %1378 = vst [vmem:[%s191 + $0x1c] sm:$0xf] %v1346
        %1379 = vst [vmem:[%s191 + $0x20] sm:$0xf] %v1347
        %1380 = vst [vmem:[%s191 + $0x24] sm:$0xf] %v1348
        %1381 = vst [vmem:[%s191 + $0x28] sm:$0xf] %v1349
        %1382 = vst [vmem:[%s191 + $0x2c] sm:$0xf] %v1350
        %1383 = vst [vmem:[%s191 + $0x30] sm:$0xf] %v1351
        %1384 = vst [vmem:[%s191 + $0x34] sm:$0xf] %v1352
        %1385 = vst [vmem:[%s191 + $0x38] sm:$0xf] %v1353
        %1386 = vst [vmem:[%s191 + $0x3c] sm:$0xf] %v1354
        %1387 = vst [vmem:[%s191 + $0x40] sm:$0xf] %v1355
        %1388 = vst [vmem:[%s191 + $0x44] sm:$0xf] %v1356
        %1389 = vst [vmem:[%s191 + $0x48] sm:$0xf] %v1357
        %1390 = vst [vmem:[%s191 + $0x4c] sm:$0xf] %v1358
        %1391 = vst [vmem:[%s191 + $0x50] sm:$0xf] %v1359
        %1392 = vst [vmem:[%s191 + $0x54] sm:$0xf] %v1360
        %1393 = vst [vmem:[%s191 + $0x58] sm:$0xf] %v1361
        %1394 = vst [vmem:[%s191 + $0x5c] sm:$0xf] %v1362
        %1395 = vst [vmem:[%s191 + $0x60] sm:$0xf] %v1363
        %1396 = vst [vmem:[%s191 + $0x64] sm:$0xf] %v1364
        %1397 = vst [vmem:[%s191 + $0x68] sm:$0xf] %v1365
        %1398 = vst [vmem:[%s191 + $0x6c] sm:$0xf] %v1366
        %1399 = vst [vmem:[%s191 + $0x70] sm:$0xf] %v1367
        %1400 = vst [vmem:[%s191 + $0x74] sm:$0xf] %v1368
        %1401 = vst [vmem:[%s191 + $0x78] sm:$0xf] %v1369
        %1402 = vst [vmem:[%s191 + $0x7c] sm:$0xf] %v1370
        %s1403 = sand.u32 %s115, 1
        %s1404 = scalar_lea.sflag [#allocation3], %s1403
        %s1405 = sand.u32 %s115, 1
        %s1406 = smul.addr %s1405, 128
        %s1407 = scalar_lea.vmem [#allocation2], %s1406
        // Predicated region
        $region37: #{tpu_custom_call.1} parent=35 // pred_check
          %p1408 = pneg %p125
        $region38: #{tpu_custom_call.1} parent=35 // pred_check_branch
          %1410 = sbr.rel (%p1408) target = $region40
        $region39: #{tpu_custom_call.1} parent=35 // pred_region
          %s1411 = smul.u32 32, %s18
          %1413 = vsyncadd %s1404, 0
          %s1414 = smul.addr %s1411, 4
          %s1415 = scalar_lea.hbm %s4, %s1414
          %s1416 = sshll.u32 %s1407, 4
          %s1417 = int_to_ptr.vmem [resolvable:$true] %s1416
          %s1418 = sshll.u32 %s1415, 4
          %s1419 = int_to_ptr.hbm [resolvable:$true] %s1418
          %1424 = dma.vmem_to_hbm [thread:$0]  %s1417, 2048, %s1419, %s1404, 64, 64, 4
        $region40: #{tpu_custom_call.1} parent=35 // pred_fallthru
          _
      $region36: #{tpu_custom_call.1} parent=5 // pred_fallthru
        _
      %p1425 = scmp.le.s32.totalorder 2, %s13
      // Predicated region
      $region41: #{tpu_custom_call.1} parent=5 // pred_check
        %p1426 = pneg %p1425
      $region42: #{tpu_custom_call.1} parent=5 // pred_check_branch
        %1428 = sbr.rel (%p1426) target = $region44
      $region43: #{tpu_custom_call.1} parent=5 // pred_region
        %s1429 = ssub.s32 %s13, 2
        // Predicated region
        $region45: #{tpu_custom_call.1} parent=43 // pred_check
          %p1430 = pneg %p131
        $region46: #{tpu_custom_call.1} parent=43 // pred_check_branch
          %1432 = sbr.rel (%p1430) target = $region48
        $region47: #{tpu_custom_call.1} parent=43 // pred_region
          %s1433 = sand.u32 %s116, 1
          %s1434 = scalar_lea.sflag [#allocation3], %s1433
          %s1435 = sand.u32 %s116, 1
          %s1436 = smul.addr %s1435, 128
          %s1437 = scalar_lea.vmem [#allocation2], %s1436
          %1439 = dma.done %s1434, 2048
        $region48: #{tpu_custom_call.1} parent=43 // pred_fallthru
          _
      $region44: #{tpu_custom_call.1} parent=5 // pred_fallthru
        _
    $region6: #{tpu_custom_call.1} parent=1 // loop_footer
      %s17 = sadd.s32 1, %s13
    $region7: #{tpu_custom_call.1} parent=1 // loop_footer_branch
      %12 = sbr.rel target = $region3
    $region8: #{tpu_custom_call.1} parent=1 // loop_exit
      _
    %1440 = vsyncpa [#allocation3], 1
    %s1441 = scalar_lea.sflag [#allocation3], 1
    %1442 = vsyncpa %s1441, 1

</llo_original>
